<compile_context>
chip_gen: v7x
topology: tpu7x:2x2x1
jax: 0.10.0
libtpu: 0.0.40
codegen_flags: <defaults>
</compile_context>

<pallas_src>
import jax
import jax.numpy as jnp
from jax import lax
from jax.experimental import pallas as pl
from jax.experimental.pallas import tpu as pltpu

# ---------------- model dimensions (small, consistent with the module) -------
N_BATCH = 2
C_IN    = 4
H_IMG   = 16
W_IMG   = 16
HW      = H_IMG * W_IMG      # 256 -> lane-dense (2 x 128 lanes)
C_ENC   = 8                  # surrogate-encoder conv channels
ENC_DIM = 32                 # encoder_out_dim
HID_DIM = 64                 # projector_hiddex_size
OUT_DIM = 16                 # projector_out_dim
BN_EPS  = 1e-5

# ---------------- packed-parameter slab layout (rows x 128 lanes, f32) -------
R_WENC  = 0                  # rows [0, 8)    : w_enc.T   (C_ENC, ENC_DIM)
R_BENC  = 8                  # row 8          : b_enc     (ENC_DIM,)
R_GAMMA = 9                  # row 9          : gamma     (HID_DIM,)
R_BETA  = 10                 # row 10         : beta      (HID_DIM,)
R_B2    = 11                 # row 11         : b2        (OUT_DIM,)
R_W1    = 16                 # rows [16, 48)  : w1.T      (ENC_DIM, HID_DIM)
R_W2    = 48                 # rows [48, 112) : w2.T      (HID_DIM, OUT_DIM)
SLAB_ROWS  = 112
SLAB_LANES = 128
OUT_LANES  = 128             # fused lane-dense output width


def barlowtwins_kernel(x_ref, wconv_ref, p_ref, out_ref):
    # x_ref:     (N, C_IN, HW)       VMEM, lane-dense (HW = 256 on lanes)
    # wconv_ref: (C_ENC * C_IN,)     SMEM f32 (cheap scalar reads)
    # p_ref:     (SLAB_ROWS, 128)    VMEM packed, pre-transposed parameters
    # out_ref:   (N, 128)            VMEM fused output [out1 | out2 | pad]
    x = x_ref[...]                                             # (N, C_IN, HW)

    # -------- surrogate encoder: 1x1 conv as unrolled VPU FMAs (K=4 is far
    # below MXU granularity), ReLU, global avg-pool as lane-axis reduce.
    feat_rows = []
    for e in range(C_ENC):
        acc = x[:, 0, :] * wconv_ref[e * C_IN + 0]             # (N, HW)
        for c in range(1, C_IN):
            acc = acc + x[:, c, :] * wconv_ref[e * C_IN + c]
        feat_rows.append(jnp.maximum(acc, 0.0))
    feat = jnp.stack(feat_rows, axis=1)                        # (N, C_ENC, HW)
    pooled = jnp.mean(feat, axis=-1)                           # (N, C_ENC)

    # encoder head: Linear(C_ENC -> ENC_DIM) + bias (weights pre-transposed)
    w_enc_t = p_ref[R_WENC:R_WENC + C_ENC, :ENC_DIM]           # (C_ENC, ENC_DIM)
    b_enc   = p_ref[R_BENC:R_BENC + 1, :ENC_DIM]               # (1, ENC_DIM)
    out1 = jnp.dot(pooled, w_enc_t,
                   preferred_element_type=jnp.float32) + b_enc # (N, ENC_DIM)

    # -------- projector MLP: Linear(no bias) -> BN1d(train) -> ReLU -> Linear
    w1_t = p_ref[R_W1:R_W1 + ENC_DIM, :HID_DIM]                # (ENC_DIM, HID_DIM)
    h = jnp.dot(out1, w1_t, preferred_element_type=jnp.float32)  # (N, HID_DIM)

    mu  = jnp.mean(h, axis=0, keepdims=True)                   # (1, HID_DIM)
    var = jnp.mean((h - mu) ** 2, axis=0, keepdims=True)       # biased (PyTorch)
    gamma = p_ref[R_GAMMA:R_GAMMA + 1, :HID_DIM]
    beta  = p_ref[R_BETA:R_BETA + 1, :HID_DIM]
    hn = (h - mu) * lax.rsqrt(var + BN_EPS) * gamma + beta
    hn = jnp.maximum(hn, 0.0)

    w2_t = p_ref[R_W2:R_W2 + HID_DIM, :OUT_DIM]                # (HID_DIM, OUT_DIM)
    b2   = p_ref[R_B2:R_B2 + 1, :OUT_DIM]                      # (1, OUT_DIM)
    out2 = jnp.dot(hn, w2_t, preferred_element_type=jnp.float32) + b2  # (N, OUT_DIM)

    # -------- single unmasked lane-dense store: [out1 | out2 | zero pad]
    pad = jnp.zeros((out1.shape[0], OUT_LANES - ENC_DIM - OUT_DIM), jnp.float32)
    out_ref[...] = jnp.concatenate([out1, out2, pad], axis=-1)


def _pack_params(params):
    """Pre-transpose weights once and pack everything but the conv weights
    into one padded VMEM slab (single parameter DMA)."""
    slab = jnp.zeros((SLAB_ROWS, SLAB_LANES), jnp.float32)
    slab = slab.at[R_WENC:R_WENC + C_ENC, :ENC_DIM].set(params["w_enc"].T)
    slab = slab.at[R_BENC, :ENC_DIM].set(params["b_enc"].reshape(-1))
    slab = slab.at[R_GAMMA, :HID_DIM].set(params["gamma"].reshape(-1))
    slab = slab.at[R_BETA, :HID_DIM].set(params["beta"].reshape(-1))
    slab = slab.at[R_B2, :OUT_DIM].set(params["b2"].reshape(-1))
    slab = slab.at[R_W1:R_W1 + ENC_DIM, :HID_DIM].set(params["w1"].T)
    slab = slab.at[R_W2:R_W2 + HID_DIM, :OUT_DIM].set(params["w2"].T)
    wconv_flat = params["w_conv"].reshape(-1).astype(jnp.float32)  # (C_ENC*C_IN,)
    return wconv_flat, slab


def barlowtwins_forward(x_nchw, params):
    """x_nchw: (N, C, H, W) float32 (PyTorch layout). Returns (out1, out2)."""
    n, c, h, w = x_nchw.shape
    # Free reshape of contiguous NCHW: spatial axis (H*W = 256) lands on lanes.
    x = x_nchw.reshape(n, c, h * w)
    wconv_flat, slab = _pack_params(params)

    vmem = pl.BlockSpec(memory_space=pltpu.MemorySpace.VMEM)
    smem = pl.BlockSpec(memory_space=pltpu.MemorySpace.SMEM)
    packed = pl.pallas_call(
        barlowtwins_kernel,
        out_shape=jax.ShapeDtypeStruct((n, OUT_LANES), jnp.float32),
        in_specs=[vmem, smem, vmem],
        out_specs=vmem,
    )(x, wconv_flat, slab)

    out1 = packed[:, :ENC_DIM]
    out2 = packed[:, ENC_DIM:ENC_DIM + OUT_DIM]
    return out1, out2


def init_params(key):
    ks = jax.random.split(key, 6)

    def lin(k, out_d, in_d, scale):
        return jax.random.normal(k, (out_d, in_d), jnp.float32) * scale

    return {
        # surrogate encoder
        "w_conv": lin(ks[0], C_ENC, C_IN, 0.2),                 # (C_ENC, C_IN)
        "w_enc":  lin(ks[1], ENC_DIM, C_ENC, 0.2),              # (ENC_DIM, C_ENC)
        "b_enc":  jax.random.normal(ks[2], (1, ENC_DIM), jnp.float32) * 0.05,
        # projector MLP (PyTorch-default-like init: gamma=1, beta=0)
        "w1":     lin(ks[3], HID_DIM, ENC_DIM, 0.1),            # (HID, ENC_DIM)
        "gamma":  jnp.ones((1, HID_DIM), jnp.float32),
        "beta":   jnp.zeros((1, HID_DIM), jnp.float32),
        "w2":     lin(ks[4], OUT_DIM, HID_DIM, 0.1),            # (OUT, HID)
        "b2":     jax.random.normal(ks[5], (1, OUT_DIM), jnp.float32) * 0.05,
    }


if __name__ == "__main__":
    key = jax.random.PRNGKey(0)
    k_x, k_p = jax.random.split(key)
    x = jax.random.normal(k_x, (N_BATCH, C_IN, H_IMG, W_IMG), jnp.float32)
    params = init_params(k_p)

    out1, out2 = barlowtwins_forward(x, params)
    jax.block_until_ready((out1, out2))

    assert out1.shape == (N_BATCH, ENC_DIM), out1.shape
    assert out2.shape == (N_BATCH, OUT_DIM), out2.shape
    assert jnp.all(jnp.isfinite(out1)) and jnp.all(jnp.isfinite(out2))
    print("KERNEL_OK")
</pallas_src>

<mosaic_0001>
module attributes {stable_mosaic.version = 11 : i64} {
  func.func @barlowtwins_kernel(%arg0: memref<2x4x256xf32, #tpu.memory_space<vmem>>, %arg1: memref<32xf32, #tpu.memory_space<smem>>, %arg2: memref<112x128xf32, #tpu.memory_space<vmem>>, %arg3: memref<2x128xf32, #tpu.memory_space<vmem>>) attributes {dimension_semantics = [], scalar_prefetch = 0 : i64, scratch_operands = 0 : i64, tpu.core_type = #tpu.core_type<tc>} {
    %c0 = arith.constant 0 : index
    %c0_0 = arith.constant 0 : index
    %c0_1 = arith.constant 0 : index
    %0 = vector.load %arg0[%c0, %c0_0, %c0_1] : memref<2x4x256xf32, #tpu.memory_space<vmem>>, vector<2x4x256xf32>
    %1 = vector.extract_strided_slice %0 {offsets = [0, 0, 0], sizes = [2, 1, 256], strides = [1, 1, 1]} : vector<2x4x256xf32> to vector<2x1x256xf32>
    %2 = vector.shape_cast %1 : vector<2x1x256xf32> to vector<2x256xf32>
    %c0_2 = arith.constant 0 : index
    %3 = memref.load %arg1[%c0_2] : memref<32xf32, #tpu.memory_space<smem>>
    %4 = vector.broadcast %3 : f32 to vector<2x256xf32>
    %5 = arith.mulf %2, %4 : vector<2x256xf32>
    %6 = vector.extract_strided_slice %0 {offsets = [0, 1, 0], sizes = [2, 1, 256], strides = [1, 1, 1]} : vector<2x4x256xf32> to vector<2x1x256xf32>
    %7 = vector.shape_cast %6 : vector<2x1x256xf32> to vector<2x256xf32>
    %c1 = arith.constant 1 : index
    %8 = memref.load %arg1[%c1] : memref<32xf32, #tpu.memory_space<smem>>
    %9 = vector.broadcast %8 : f32 to vector<2x256xf32>
    %10 = arith.mulf %7, %9 : vector<2x256xf32>
    %11 = arith.addf %5, %10 : vector<2x256xf32>
    %12 = vector.extract_strided_slice %0 {offsets = [0, 2, 0], sizes = [2, 1, 256], strides = [1, 1, 1]} : vector<2x4x256xf32> to vector<2x1x256xf32>
    %13 = vector.shape_cast %12 : vector<2x1x256xf32> to vector<2x256xf32>
    %c2 = arith.constant 2 : index
    %14 = memref.load %arg1[%c2] : memref<32xf32, #tpu.memory_space<smem>>
    %15 = vector.broadcast %14 : f32 to vector<2x256xf32>
    %16 = arith.mulf %13, %15 : vector<2x256xf32>
    %17 = arith.addf %11, %16 : vector<2x256xf32>
    %18 = vector.extract_strided_slice %0 {offsets = [0, 3, 0], sizes = [2, 1, 256], strides = [1, 1, 1]} : vector<2x4x256xf32> to vector<2x1x256xf32>
    %19 = vector.shape_cast %18 : vector<2x1x256xf32> to vector<2x256xf32>
    %c3 = arith.constant 3 : index
    %20 = memref.load %arg1[%c3] : memref<32xf32, #tpu.memory_space<smem>>
    %21 = vector.broadcast %20 : f32 to vector<2x256xf32>
    %22 = arith.mulf %19, %21 : vector<2x256xf32>
    %23 = arith.addf %17, %22 : vector<2x256xf32>
    %cst = arith.constant 0.000000e+00 : f32
    %24 = vector.broadcast %cst : f32 to vector<2x256xf32>
    %25 = arith.maximumf %23, %24 : vector<2x256xf32>
    %26 = vector.extract_strided_slice %0 {offsets = [0, 0, 0], sizes = [2, 1, 256], strides = [1, 1, 1]} : vector<2x4x256xf32> to vector<2x1x256xf32>
    %27 = vector.shape_cast %26 : vector<2x1x256xf32> to vector<2x256xf32>
    %c4 = arith.constant 4 : index
    %28 = memref.load %arg1[%c4] : memref<32xf32, #tpu.memory_space<smem>>
    %29 = vector.broadcast %28 : f32 to vector<2x256xf32>
    %30 = arith.mulf %27, %29 : vector<2x256xf32>
    %31 = vector.extract_strided_slice %0 {offsets = [0, 1, 0], sizes = [2, 1, 256], strides = [1, 1, 1]} : vector<2x4x256xf32> to vector<2x1x256xf32>
    %32 = vector.shape_cast %31 : vector<2x1x256xf32> to vector<2x256xf32>
    %c5 = arith.constant 5 : index
    %33 = memref.load %arg1[%c5] : memref<32xf32, #tpu.memory_space<smem>>
    %34 = vector.broadcast %33 : f32 to vector<2x256xf32>
    %35 = arith.mulf %32, %34 : vector<2x256xf32>
    %36 = arith.addf %30, %35 : vector<2x256xf32>
    %37 = vector.extract_strided_slice %0 {offsets = [0, 2, 0], sizes = [2, 1, 256], strides = [1, 1, 1]} : vector<2x4x256xf32> to vector<2x1x256xf32>
    %38 = vector.shape_cast %37 : vector<2x1x256xf32> to vector<2x256xf32>
    %c6 = arith.constant 6 : index
    %39 = memref.load %arg1[%c6] : memref<32xf32, #tpu.memory_space<smem>>
    %40 = vector.broadcast %39 : f32 to vector<2x256xf32>
    %41 = arith.mulf %38, %40 : vector<2x256xf32>
    %42 = arith.addf %36, %41 : vector<2x256xf32>
    %43 = vector.extract_strided_slice %0 {offsets = [0, 3, 0], sizes = [2, 1, 256], strides = [1, 1, 1]} : vector<2x4x256xf32> to vector<2x1x256xf32>
    %44 = vector.shape_cast %43 : vector<2x1x256xf32> to vector<2x256xf32>
    %c7 = arith.constant 7 : index
    %45 = memref.load %arg1[%c7] : memref<32xf32, #tpu.memory_space<smem>>
    %46 = vector.broadcast %45 : f32 to vector<2x256xf32>
    %47 = arith.mulf %44, %46 : vector<2x256xf32>
    %48 = arith.addf %42, %47 : vector<2x256xf32>
    %cst_3 = arith.constant 0.000000e+00 : f32
    %49 = vector.broadcast %cst_3 : f32 to vector<2x256xf32>
    %50 = arith.maximumf %48, %49 : vector<2x256xf32>
    %51 = vector.extract_strided_slice %0 {offsets = [0, 0, 0], sizes = [2, 1, 256], strides = [1, 1, 1]} : vector<2x4x256xf32> to vector<2x1x256xf32>
    %52 = vector.shape_cast %51 : vector<2x1x256xf32> to vector<2x256xf32>
    %c8 = arith.constant 8 : index
    %53 = memref.load %arg1[%c8] : memref<32xf32, #tpu.memory_space<smem>>
    %54 = vector.broadcast %53 : f32 to vector<2x256xf32>
    %55 = arith.mulf %52, %54 : vector<2x256xf32>
    %56 = vector.extract_strided_slice %0 {offsets = [0, 1, 0], sizes = [2, 1, 256], strides = [1, 1, 1]} : vector<2x4x256xf32> to vector<2x1x256xf32>
    %57 = vector.shape_cast %56 : vector<2x1x256xf32> to vector<2x256xf32>
    %c9 = arith.constant 9 : index
    %58 = memref.load %arg1[%c9] : memref<32xf32, #tpu.memory_space<smem>>
    %59 = vector.broadcast %58 : f32 to vector<2x256xf32>
    %60 = arith.mulf %57, %59 : vector<2x256xf32>
    %61 = arith.addf %55, %60 : vector<2x256xf32>
    %62 = vector.extract_strided_slice %0 {offsets = [0, 2, 0], sizes = [2, 1, 256], strides = [1, 1, 1]} : vector<2x4x256xf32> to vector<2x1x256xf32>
    %63 = vector.shape_cast %62 : vector<2x1x256xf32> to vector<2x256xf32>
    %c10 = arith.constant 10 : index
    %64 = memref.load %arg1[%c10] : memref<32xf32, #tpu.memory_space<smem>>
    %65 = vector.broadcast %64 : f32 to vector<2x256xf32>
    %66 = arith.mulf %63, %65 : vector<2x256xf32>
    %67 = arith.addf %61, %66 : vector<2x256xf32>
    %68 = vector.extract_strided_slice %0 {offsets = [0, 3, 0], sizes = [2, 1, 256], strides = [1, 1, 1]} : vector<2x4x256xf32> to vector<2x1x256xf32>
    %69 = vector.shape_cast %68 : vector<2x1x256xf32> to vector<2x256xf32>
    %c11 = arith.constant 11 : index
    %70 = memref.load %arg1[%c11] : memref<32xf32, #tpu.memory_space<smem>>
    %71 = vector.broadcast %70 : f32 to vector<2x256xf32>
    %72 = arith.mulf %69, %71 : vector<2x256xf32>
    %73 = arith.addf %67, %72 : vector<2x256xf32>
    %cst_4 = arith.constant 0.000000e+00 : f32
    %74 = vector.broadcast %cst_4 : f32 to vector<2x256xf32>
    %75 = arith.maximumf %73, %74 : vector<2x256xf32>
    %76 = vector.extract_strided_slice %0 {offsets = [0, 0, 0], sizes = [2, 1, 256], strides = [1, 1, 1]} : vector<2x4x256xf32> to vector<2x1x256xf32>
    %77 = vector.shape_cast %76 : vector<2x1x256xf32> to vector<2x256xf32>
    %c12 = arith.constant 12 : index
    %78 = memref.load %arg1[%c12] : memref<32xf32, #tpu.memory_space<smem>>
    %79 = vector.broadcast %78 : f32 to vector<2x256xf32>
    %80 = arith.mulf %77, %79 : vector<2x256xf32>
    %81 = vector.extract_strided_slice %0 {offsets = [0, 1, 0], sizes = [2, 1, 256], strides = [1, 1, 1]} : vector<2x4x256xf32> to vector<2x1x256xf32>
    %82 = vector.shape_cast %81 : vector<2x1x256xf32> to vector<2x256xf32>
    %c13 = arith.constant 13 : index
    %83 = memref.load %arg1[%c13] : memref<32xf32, #tpu.memory_space<smem>>
    %84 = vector.broadcast %83 : f32 to vector<2x256xf32>
    %85 = arith.mulf %82, %84 : vector<2x256xf32>
    %86 = arith.addf %80, %85 : vector<2x256xf32>
    %87 = vector.extract_strided_slice %0 {offsets = [0, 2, 0], sizes = [2, 1, 256], strides = [1, 1, 1]} : vector<2x4x256xf32> to vector<2x1x256xf32>
    %88 = vector.shape_cast %87 : vector<2x1x256xf32> to vector<2x256xf32>
    %c14 = arith.constant 14 : index
    %89 = memref.load %arg1[%c14] : memref<32xf32, #tpu.memory_space<smem>>
    %90 = vector.broadcast %89 : f32 to vector<2x256xf32>
    %91 = arith.mulf %88, %90 : vector<2x256xf32>
    %92 = arith.addf %86, %91 : vector<2x256xf32>
    %93 = vector.extract_strided_slice %0 {offsets = [0, 3, 0], sizes = [2, 1, 256], strides = [1, 1, 1]} : vector<2x4x256xf32> to vector<2x1x256xf32>
    %94 = vector.shape_cast %93 : vector<2x1x256xf32> to vector<2x256xf32>
    %c15 = arith.constant 15 : index
    %95 = memref.load %arg1[%c15] : memref<32xf32, #tpu.memory_space<smem>>
    %96 = vector.broadcast %95 : f32 to vector<2x256xf32>
    %97 = arith.mulf %94, %96 : vector<2x256xf32>
    %98 = arith.addf %92, %97 : vector<2x256xf32>
    %cst_5 = arith.constant 0.000000e+00 : f32
    %99 = vector.broadcast %cst_5 : f32 to vector<2x256xf32>
    %100 = arith.maximumf %98, %99 : vector<2x256xf32>
    %101 = vector.extract_strided_slice %0 {offsets = [0, 0, 0], sizes = [2, 1, 256], strides = [1, 1, 1]} : vector<2x4x256xf32> to vector<2x1x256xf32>
    %102 = vector.shape_cast %101 : vector<2x1x256xf32> to vector<2x256xf32>
    %c16 = arith.constant 16 : index
    %103 = memref.load %arg1[%c16] : memref<32xf32, #tpu.memory_space<smem>>
    %104 = vector.broadcast %103 : f32 to vector<2x256xf32>
    %105 = arith.mulf %102, %104 : vector<2x256xf32>
    %106 = vector.extract_strided_slice %0 {offsets = [0, 1, 0], sizes = [2, 1, 256], strides = [1, 1, 1]} : vector<2x4x256xf32> to vector<2x1x256xf32>
    %107 = vector.shape_cast %106 : vector<2x1x256xf32> to vector<2x256xf32>
    %c17 = arith.constant 17 : index
    %108 = memref.load %arg1[%c17] : memref<32xf32, #tpu.memory_space<smem>>
    %109 = vector.broadcast %108 : f32 to vector<2x256xf32>
    %110 = arith.mulf %107, %109 : vector<2x256xf32>
    %111 = arith.addf %105, %110 : vector<2x256xf32>
    %112 = vector.extract_strided_slice %0 {offsets = [0, 2, 0], sizes = [2, 1, 256], strides = [1, 1, 1]} : vector<2x4x256xf32> to vector<2x1x256xf32>
    %113 = vector.shape_cast %112 : vector<2x1x256xf32> to vector<2x256xf32>
    %c18 = arith.constant 18 : index
    %114 = memref.load %arg1[%c18] : memref<32xf32, #tpu.memory_space<smem>>
    %115 = vector.broadcast %114 : f32 to vector<2x256xf32>
    %116 = arith.mulf %113, %115 : vector<2x256xf32>
    %117 = arith.addf %111, %116 : vector<2x256xf32>
    %118 = vector.extract_strided_slice %0 {offsets = [0, 3, 0], sizes = [2, 1, 256], strides = [1, 1, 1]} : vector<2x4x256xf32> to vector<2x1x256xf32>
    %119 = vector.shape_cast %118 : vector<2x1x256xf32> to vector<2x256xf32>
    %c19 = arith.constant 19 : index
    %120 = memref.load %arg1[%c19] : memref<32xf32, #tpu.memory_space<smem>>
    %121 = vector.broadcast %120 : f32 to vector<2x256xf32>
    %122 = arith.mulf %119, %121 : vector<2x256xf32>
    %123 = arith.addf %117, %122 : vector<2x256xf32>
    %cst_6 = arith.constant 0.000000e+00 : f32
    %124 = vector.broadcast %cst_6 : f32 to vector<2x256xf32>
    %125 = arith.maximumf %123, %124 : vector<2x256xf32>
    %126 = vector.extract_strided_slice %0 {offsets = [0, 0, 0], sizes = [2, 1, 256], strides = [1, 1, 1]} : vector<2x4x256xf32> to vector<2x1x256xf32>
    %127 = vector.shape_cast %126 : vector<2x1x256xf32> to vector<2x256xf32>
    %c20 = arith.constant 20 : index
    %128 = memref.load %arg1[%c20] : memref<32xf32, #tpu.memory_space<smem>>
    %129 = vector.broadcast %128 : f32 to vector<2x256xf32>
    %130 = arith.mulf %127, %129 : vector<2x256xf32>
    %131 = vector.extract_strided_slice %0 {offsets = [0, 1, 0], sizes = [2, 1, 256], strides = [1, 1, 1]} : vector<2x4x256xf32> to vector<2x1x256xf32>
    %132 = vector.shape_cast %131 : vector<2x1x256xf32> to vector<2x256xf32>
    %c21 = arith.constant 21 : index
    %133 = memref.load %arg1[%c21] : memref<32xf32, #tpu.memory_space<smem>>
    %134 = vector.broadcast %133 : f32 to vector<2x256xf32>
    %135 = arith.mulf %132, %134 : vector<2x256xf32>
    %136 = arith.addf %130, %135 : vector<2x256xf32>
    %137 = vector.extract_strided_slice %0 {offsets = [0, 2, 0], sizes = [2, 1, 256], strides = [1, 1, 1]} : vector<2x4x256xf32> to vector<2x1x256xf32>
    %138 = vector.shape_cast %137 : vector<2x1x256xf32> to vector<2x256xf32>
    %c22 = arith.constant 22 : index
    %139 = memref.load %arg1[%c22] : memref<32xf32, #tpu.memory_space<smem>>
    %140 = vector.broadcast %139 : f32 to vector<2x256xf32>
    %141 = arith.mulf %138, %140 : vector<2x256xf32>
    %142 = arith.addf %136, %141 : vector<2x256xf32>
    %143 = vector.extract_strided_slice %0 {offsets = [0, 3, 0], sizes = [2, 1, 256], strides = [1, 1, 1]} : vector<2x4x256xf32> to vector<2x1x256xf32>
    %144 = vector.shape_cast %143 : vector<2x1x256xf32> to vector<2x256xf32>
    %c23 = arith.constant 23 : index
    %145 = memref.load %arg1[%c23] : memref<32xf32, #tpu.memory_space<smem>>
    %146 = vector.broadcast %145 : f32 to vector<2x256xf32>
    %147 = arith.mulf %144, %146 : vector<2x256xf32>
    %148 = arith.addf %142, %147 : vector<2x256xf32>
    %cst_7 = arith.constant 0.000000e+00 : f32
    %149 = vector.broadcast %cst_7 : f32 to vector<2x256xf32>
    %150 = arith.maximumf %148, %149 : vector<2x256xf32>
    %151 = vector.extract_strided_slice %0 {offsets = [0, 0, 0], sizes = [2, 1, 256], strides = [1, 1, 1]} : vector<2x4x256xf32> to vector<2x1x256xf32>
    %152 = vector.shape_cast %151 : vector<2x1x256xf32> to vector<2x256xf32>
    %c24 = arith.constant 24 : index
    %153 = memref.load %arg1[%c24] : memref<32xf32, #tpu.memory_space<smem>>
    %154 = vector.broadcast %153 : f32 to vector<2x256xf32>
    %155 = arith.mulf %152, %154 : vector<2x256xf32>
    %156 = vector.extract_strided_slice %0 {offsets = [0, 1, 0], sizes = [2, 1, 256], strides = [1, 1, 1]} : vector<2x4x256xf32> to vector<2x1x256xf32>
    %157 = vector.shape_cast %156 : vector<2x1x256xf32> to vector<2x256xf32>
    %c25 = arith.constant 25 : index
    %158 = memref.load %arg1[%c25] : memref<32xf32, #tpu.memory_space<smem>>
    %159 = vector.broadcast %158 : f32 to vector<2x256xf32>
    %160 = arith.mulf %157, %159 : vector<2x256xf32>
    %161 = arith.addf %155, %160 : vector<2x256xf32>
    %162 = vector.extract_strided_slice %0 {offsets = [0, 2, 0], sizes = [2, 1, 256], strides = [1, 1, 1]} : vector<2x4x256xf32> to vector<2x1x256xf32>
    %163 = vector.shape_cast %162 : vector<2x1x256xf32> to vector<2x256xf32>
    %c26 = arith.constant 26 : index
    %164 = memref.load %arg1[%c26] : memref<32xf32, #tpu.memory_space<smem>>
    %165 = vector.broadcast %164 : f32 to vector<2x256xf32>
    %166 = arith.mulf %163, %165 : vector<2x256xf32>
    %167 = arith.addf %161, %166 : vector<2x256xf32>
    %168 = vector.extract_strided_slice %0 {offsets = [0, 3, 0], sizes = [2, 1, 256], strides = [1, 1, 1]} : vector<2x4x256xf32> to vector<2x1x256xf32>
    %169 = vector.shape_cast %168 : vector<2x1x256xf32> to vector<2x256xf32>
    %c27 = arith.constant 27 : index
    %170 = memref.load %arg1[%c27] : memref<32xf32, #tpu.memory_space<smem>>
    %171 = vector.broadcast %170 : f32 to vector<2x256xf32>
    %172 = arith.mulf %169, %171 : vector<2x256xf32>
    %173 = arith.addf %167, %172 : vector<2x256xf32>
    %cst_8 = arith.constant 0.000000e+00 : f32
    %174 = vector.broadcast %cst_8 : f32 to vector<2x256xf32>
    %175 = arith.maximumf %173, %174 : vector<2x256xf32>
    %176 = vector.extract_strided_slice %0 {offsets = [0, 0, 0], sizes = [2, 1, 256], strides = [1, 1, 1]} : vector<2x4x256xf32> to vector<2x1x256xf32>
    %177 = vector.shape_cast %176 : vector<2x1x256xf32> to vector<2x256xf32>
    %c28 = arith.constant 28 : index
    %178 = memref.load %arg1[%c28] : memref<32xf32, #tpu.memory_space<smem>>
    %179 = vector.broadcast %178 : f32 to vector<2x256xf32>
    %180 = arith.mulf %177, %179 : vector<2x256xf32>
    %181 = vector.extract_strided_slice %0 {offsets = [0, 1, 0], sizes = [2, 1, 256], strides = [1, 1, 1]} : vector<2x4x256xf32> to vector<2x1x256xf32>
    %182 = vector.shape_cast %181 : vector<2x1x256xf32> to vector<2x256xf32>
    %c29 = arith.constant 29 : index
    %183 = memref.load %arg1[%c29] : memref<32xf32, #tpu.memory_space<smem>>
    %184 = vector.broadcast %183 : f32 to vector<2x256xf32>
    %185 = arith.mulf %182, %184 : vector<2x256xf32>
    %186 = arith.addf %180, %185 : vector<2x256xf32>
    %187 = vector.extract_strided_slice %0 {offsets = [0, 2, 0], sizes = [2, 1, 256], strides = [1, 1, 1]} : vector<2x4x256xf32> to vector<2x1x256xf32>
    %188 = vector.shape_cast %187 : vector<2x1x256xf32> to vector<2x256xf32>
    %c30 = arith.constant 30 : index
    %189 = memref.load %arg1[%c30] : memref<32xf32, #tpu.memory_space<smem>>
    %190 = vector.broadcast %189 : f32 to vector<2x256xf32>
    %191 = arith.mulf %188, %190 : vector<2x256xf32>
    %192 = arith.addf %186, %191 : vector<2x256xf32>
    %193 = vector.extract_strided_slice %0 {offsets = [0, 3, 0], sizes = [2, 1, 256], strides = [1, 1, 1]} : vector<2x4x256xf32> to vector<2x1x256xf32>
    %194 = vector.shape_cast %193 : vector<2x1x256xf32> to vector<2x256xf32>
    %c31 = arith.constant 31 : index
    %195 = memref.load %arg1[%c31] : memref<32xf32, #tpu.memory_space<smem>>
    %196 = vector.broadcast %195 : f32 to vector<2x256xf32>
    %197 = arith.mulf %194, %196 : vector<2x256xf32>
    %198 = arith.addf %192, %197 : vector<2x256xf32>
    %cst_9 = arith.constant 0.000000e+00 : f32
    %199 = vector.broadcast %cst_9 : f32 to vector<2x256xf32>
    %200 = arith.maximumf %198, %199 : vector<2x256xf32>
    %201 = vector.shape_cast %25 : vector<2x256xf32> to vector<2x1x256xf32>
    %202 = vector.shape_cast %50 : vector<2x256xf32> to vector<2x1x256xf32>
    %203 = vector.shape_cast %75 : vector<2x256xf32> to vector<2x1x256xf32>
    %204 = vector.shape_cast %100 : vector<2x256xf32> to vector<2x1x256xf32>
    %205 = vector.shape_cast %125 : vector<2x256xf32> to vector<2x1x256xf32>
    %206 = vector.shape_cast %150 : vector<2x256xf32> to vector<2x1x256xf32>
    %207 = vector.shape_cast %175 : vector<2x256xf32> to vector<2x1x256xf32>
    %208 = vector.shape_cast %200 : vector<2x256xf32> to vector<2x1x256xf32>
    %209 = tpu.concatenate %201, %202, %203, %204, %205, %206, %207, %208 in 1 : vector<2x1x256xf32>, vector<2x1x256xf32>, vector<2x1x256xf32>, vector<2x1x256xf32>, vector<2x1x256xf32>, vector<2x1x256xf32>, vector<2x1x256xf32>, vector<2x1x256xf32> -> vector<2x8x256xf32>
    %cst_10 = arith.constant dense<0.000000e+00> : vector<2x8xf32>
    %210 = vector.multi_reduction <add>, %209, %cst_10 [2] : vector<2x8x256xf32> to vector<2x8xf32>
    %cst_11 = arith.constant 2.560000e+02 : f32
    %211 = vector.broadcast %cst_11 : f32 to vector<2x8xf32>
    %212 = arith.divf %210, %211 : vector<2x8xf32>
    %c0_12 = arith.constant 0 : index
    %c0_13 = arith.constant 0 : index
    %213 = vector.load %arg2[%c0_12, %c0_13] : memref<112x128xf32, #tpu.memory_space<vmem>>, vector<8x32xf32>
    %c8_14 = arith.constant 8 : index
    %c0_15 = arith.constant 0 : index
    %214 = vector.load %arg2[%c8_14, %c0_15] : memref<112x128xf32, #tpu.memory_space<vmem>>, vector<1x32xf32>
    %cst_16 = arith.constant dense<0.000000e+00> : vector<2x32xf32>
    %215 = tpu.matmul %212, %213, %cst_16 {dimension_numbers = #tpu.dot_dimension_numbers<[1], [0], [0], [1], [0, 0, 1, 1], [], []>} : vector<2x8xf32>, vector<8x32xf32>, vector<2x32xf32> -> vector<2x32xf32>
    %216 = vector.broadcast %214 : vector<1x32xf32> to vector<2x32xf32>
    %217 = arith.addf %215, %216 : vector<2x32xf32>
    %c16_17 = arith.constant 16 : index
    %c0_18 = arith.constant 0 : index
    %218 = vector.load %arg2[%c16_17, %c0_18] : memref<112x128xf32, #tpu.memory_space<vmem>>, vector<32x64xf32>
    %cst_19 = arith.constant dense<0.000000e+00> : vector<2x64xf32>
    %219 = tpu.matmul %217, %218, %cst_19 {dimension_numbers = #tpu.dot_dimension_numbers<[1], [0], [0], [1], [0, 0, 1, 1], [], []>} : vector<2x32xf32>, vector<32x64xf32>, vector<2x64xf32> -> vector<2x64xf32>
    %cst_20 = arith.constant dense<0.000000e+00> : vector<64xf32>
    %220 = vector.multi_reduction <add>, %219, %cst_20 [0] : vector<2x64xf32> to vector<64xf32>
    %221 = vector.shape_cast %220 : vector<64xf32> to vector<1x64xf32>
    %cst_21 = arith.constant 2.000000e+00 : f32
    %222 = vector.broadcast %cst_21 : f32 to vector<1x64xf32>
    %223 = arith.divf %221, %222 : vector<1x64xf32>
    %224 = vector.broadcast %223 : vector<1x64xf32> to vector<2x64xf32>
    %225 = arith.subf %219, %224 : vector<2x64xf32>
    %226 = arith.mulf %225, %225 : vector<2x64xf32>
    %cst_22 = arith.constant dense<0.000000e+00> : vector<64xf32>
    %227 = vector.multi_reduction <add>, %226, %cst_22 [0] : vector<2x64xf32> to vector<64xf32>
    %228 = vector.shape_cast %227 : vector<64xf32> to vector<1x64xf32>
    %cst_23 = arith.constant 2.000000e+00 : f32
    %229 = vector.broadcast %cst_23 : f32 to vector<1x64xf32>
    %230 = arith.divf %228, %229 : vector<1x64xf32>
    %c9_24 = arith.constant 9 : index
    %c0_25 = arith.constant 0 : index
    %231 = vector.load %arg2[%c9_24, %c0_25] : memref<112x128xf32, #tpu.memory_space<vmem>>, vector<1x64xf32>
    %c10_26 = arith.constant 10 : index
    %c0_27 = arith.constant 0 : index
    %232 = vector.load %arg2[%c10_26, %c0_27] : memref<112x128xf32, #tpu.memory_space<vmem>>, vector<1x64xf32>
    %233 = vector.broadcast %223 : vector<1x64xf32> to vector<2x64xf32>
    %234 = arith.subf %219, %233 : vector<2x64xf32>
    %cst_28 = arith.constant 9.99999974E-6 : f32
    %235 = vector.broadcast %cst_28 : f32 to vector<1x64xf32>
    %236 = arith.addf %230, %235 : vector<1x64xf32>
    %237 = math.rsqrt %236 : vector<1x64xf32>
    %238 = vector.broadcast %237 : vector<1x64xf32> to vector<2x64xf32>
    %239 = arith.mulf %234, %238 : vector<2x64xf32>
    %240 = vector.broadcast %231 : vector<1x64xf32> to vector<2x64xf32>
    %241 = arith.mulf %239, %240 : vector<2x64xf32>
    %242 = vector.broadcast %232 : vector<1x64xf32> to vector<2x64xf32>
    %243 = arith.addf %241, %242 : vector<2x64xf32>
    %cst_29 = arith.constant 0.000000e+00 : f32
    %244 = vector.broadcast %cst_29 : f32 to vector<2x64xf32>
    %245 = arith.maximumf %243, %244 : vector<2x64xf32>
    %c48 = arith.constant 48 : index
    %c0_30 = arith.constant 0 : index
    %246 = vector.load %arg2[%c48, %c0_30] : memref<112x128xf32, #tpu.memory_space<vmem>>, vector<64x16xf32>
    %c11_31 = arith.constant 11 : index
    %c0_32 = arith.constant 0 : index
    %247 = vector.load %arg2[%c11_31, %c0_32] : memref<112x128xf32, #tpu.memory_space<vmem>>, vector<1x16xf32>
    %cst_33 = arith.constant dense<0.000000e+00> : vector<2x16xf32>
    %248 = tpu.matmul %245, %246, %cst_33 {dimension_numbers = #tpu.dot_dimension_numbers<[1], [0], [0], [1], [0, 0, 1, 1], [], []>} : vector<2x64xf32>, vector<64x16xf32>, vector<2x16xf32> -> vector<2x16xf32>
    %249 = vector.broadcast %247 : vector<1x16xf32> to vector<2x16xf32>
    %250 = arith.addf %248, %249 : vector<2x16xf32>
    %cst_34 = arith.constant 0.000000e+00 : f32
    %251 = vector.broadcast %cst_34 : f32 to vector<2x80xf32>
    %252 = tpu.concatenate %217, %250, %251 in 1 : vector<2x32xf32>, vector<2x16xf32>, vector<2x80xf32> -> vector<2x128xf32>
    %c0_35 = arith.constant 0 : index
    %c0_36 = arith.constant 0 : index
    %253 = vector.load %arg3[%c0_35, %c0_36] : memref<2x128xf32, #tpu.memory_space<vmem>>, vector<2x128xf32>
    tpu.vector_store %arg3[%c0_35, %c0_36], %252 {strides = array<i32>} : memref<2x128xf32, #tpu.memory_space<vmem>>, vector<2x128xf32>,
    return
  }
}

</mosaic_0001>

<llo_original>
// kernel: tpu_custom_call.1
$region0: #{tpu_custom_call.1}
  #allocation0 [shape = 'u32[]', space=smem, size = 0x4, offset = 0x4, fixed_abs, tag = 'smem constant byte address 0x4 - core index']
  #allocation1 [shape = 'u32[144,128]{1,0:T(1,128)}', space=vmem, size = 0x12000, scoped, tag = 'internal scratch']
  %s0 = inlined_call_operand.hbm [shape: f32[2,4,256], index: 0, kind: input, shape index: {}]
  %s1 = inlined_call_operand.vmem [shape: f32[32], index: 1, kind: input, shape index: {}]
  %s2 = inlined_call_operand.hbm [shape: f32[112,128], index: 2, kind: input, shape index: {}]
  %s3 = inlined_call_operand.hbm [shape: f32[2,128], index: 3, kind: output, shape index: {}]
  %s4 = sld [smem:[#allocation0]]
  $region34: #{tpu_custom_call.1} parent=0
    _
  %s6 = ssub.s32 1, %s4
  %s7 = scalar_select 0, %s6, %s4
  $region1: #{tpu_custom_call.1} parent=0
    #allocation2 [shape = 'u8[8192]{0}', space=vmem, size = 0x2000, scoped, tag = 'input window, operand 0, single buffered']
    #allocation3 [shape = 's32[1]{0}', space=sflag, size = 0x4, scoped, tag = 'scoped memory for tpu_custom_call.1']
    #allocation4 [shape = 's32[1]{0}', space=sflag, size = 0x4, scoped, tag = 'scoped memory for tpu_custom_call.1']
    #allocation5 [shape = 's32[1]{0}', space=sflag, size = 0x4, scoped, tag = 'scoped memory for tpu_custom_call.1']
    #allocation6 [shape = 'u8[512]{0}', space=smem, size = 0x200, scoped, tag = 'input window, operand 1, single buffered']
    #allocation7 [shape = 'u8[57344]{0}', space=vmem, size = 0xe000, scoped, tag = 'input window, operand 2, single buffered']
    #allocation8 [shape = 's32[1]{0}', space=sflag, size = 0x4, scoped, tag = 'scoped memory for tpu_custom_call.1']
    #allocation9 [shape = 'u8[1024]{0}', space=vmem, size = 0x400, scoped, tag = 'output window, operand 0, single buffered']
    %8 = vsyncpa [#allocation3], 0
    %9 = vsyncpa [#allocation5], 0
    %10 = vsyncpa [#allocation8], 0
    %11 = vsyncpa [#allocation4], 0
    // Predicated region
    $region2: #{tpu_custom_call.1} parent=1 // pred_check
      _
    $region3: #{tpu_custom_call.1} parent=1 // pred_check_branch
      %13 = sbr.rel (0) target = $region5
    $region4: #{tpu_custom_call.1} parent=1 // pred_region
      %s15 = ssub.s32 256, 256
      %16 = vsyncadd [#allocation3], %s15
      %s17 = sshll.u32 [#allocation2], 4
      %s18 = int_to_ptr.vmem [resolvable:$true] %s17
      %23 = dma.hbm_to_vmem [thread:$0]  %s0, 256, %s18, [#allocation3], 128, 128, 8
    $region5: #{tpu_custom_call.1} parent=1 // pred_fallthru
      _
    // Predicated region
    $region6: #{tpu_custom_call.1} parent=1 // pred_check
      _
    $region7: #{tpu_custom_call.1} parent=1 // pred_check_branch
      %25 = sbr.rel (0) target = $region9
    $region8: #{tpu_custom_call.1} parent=1 // pred_region
      %s27 = ssub.s32 16, 16
      %28 = vsyncadd [#allocation5], %s27
      %s30 = sshll.u32 %s1, 4
      %s31 = int_to_ptr.vmem [resolvable:$true] %s30
      %33 = dma.vmem_to_smem %s31, 16, [#allocation6], [#allocation5]
    $region9: #{tpu_custom_call.1} parent=1 // pred_fallthru
      _
    // Predicated region
    $region10: #{tpu_custom_call.1} parent=1 // pred_check
      _
    $region11: #{tpu_custom_call.1} parent=1 // pred_check_branch
      %35 = sbr.rel (0) target = $region13
    $region12: #{tpu_custom_call.1} parent=1 // pred_region
      %s37 = ssub.s32 1792, 1792
      %38 = vsyncadd [#allocation8], %s37
      %s39 = sshll.u32 [#allocation7], 4
      %s40 = int_to_ptr.vmem [resolvable:$true] %s39
      %45 = dma.hbm_to_vmem [thread:$0]  %s2, 1792, %s40, [#allocation8], 128, 128, 8
    $region13: #{tpu_custom_call.1} parent=1 // pred_fallthru
      _
    // Predicated region
    $region14: #{tpu_custom_call.1} parent=1 // pred_check
      _
    $region15: #{tpu_custom_call.1} parent=1 // pred_check_branch
      %47 = sbr.rel (0) target = $region17
    $region16: #{tpu_custom_call.1} parent=1 // pred_region
      %48 = dma.done [#allocation3], 256
    $region17: #{tpu_custom_call.1} parent=1 // pred_fallthru
      _
    // Predicated region
    $region18: #{tpu_custom_call.1} parent=1 // pred_check
      _
    $region19: #{tpu_custom_call.1} parent=1 // pred_check_branch
      %50 = sbr.rel (0) target = $region21
    $region20: #{tpu_custom_call.1} parent=1 // pred_region
      %51 = dma.done [#allocation5], 16
    $region21: #{tpu_custom_call.1} parent=1 // pred_fallthru
      _
    // Predicated region
    $region22: #{tpu_custom_call.1} parent=1 // pred_check
      _
    $region23: #{tpu_custom_call.1} parent=1 // pred_check_branch
      %53 = sbr.rel (0) target = $region25
    $region24: #{tpu_custom_call.1} parent=1 // pred_region
      %54 = dma.done [#allocation8], 1792
    $region25: #{tpu_custom_call.1} parent=1 // pred_fallthru
      _
    %55 = sfence
    %v56 = vld [vmem:[#allocation2] sm:$0xff]
    %v57 = vld [vmem:[#allocation2 + $0x8] sm:$0xff]
    %s58 = sld [smem:[#allocation6]]
    %v59 = vstv %s58
    %v60 = vmul.f32 %v56, %v59
    %v61 = vmul.f32 %v57, %v59
    %s62 = sld [smem:[#allocation6 + $0x1]]
    %v63 = vstv %s62
    %v64 = vmul.f32 %v56, %v63
    %v65 = vmul.f32 %v57, %v63
    %v68 = vrot.slane %v64, 5
    %v69 = vrot.slane %v68, 4
    %v70 = vrot.slane %v65, 5
    %v71 = vrot.slane %v70, 4
    %v74 = vadd.f32 %v60, %v69
    %v75 = vadd.f32 %v61, %v71
    %s76 = sld [smem:[#allocation6 + $0x2]]
    %v77 = vstv %s76
    %v78 = vmul.f32 %v56, %v77
    %v79 = vmul.f32 %v57, %v77
    %v82 = vrot.slane %v78, 6
    %v83 = vrot.slane %v82, 4
    %v84 = vrot.slane %v79, 6
    %v85 = vrot.slane %v84, 4
    %v88 = vadd.f32 %v74, %v83
    %v89 = vadd.f32 %v75, %v85
    %s90 = sld [smem:[#allocation6 + $0x3]]
    %v91 = vstv %s90
    %v92 = vmul.f32 %v56, %v91
    %v93 = vmul.f32 %v57, %v91
    %v96 = vrot.slane %v92, 7
    %v97 = vrot.slane %v96, 4
    %v98 = vrot.slane %v93, 7
    %v99 = vrot.slane %v98, 4
    %v102 = vadd.f32 %v88, %v97
    %v103 = vadd.f32 %v89, %v99
    %v104 = vmax.f32 %v102, 0.0
    %v105 = vmax.f32 %v103, 0.0
    %s106 = sld [smem:[#allocation6 + $0x4]]
    %v107 = vstv %s106
    %v108 = vmul.f32 %v56, %v107
    %v109 = vmul.f32 %v57, %v107
    %s110 = sld [smem:[#allocation6 + $0x5]]
    %v111 = vstv %s110
    %v112 = vmul.f32 %v56, %v111
    %v113 = vmul.f32 %v57, %v111
    %v116 = vrot.slane %v112, 5
    %v117 = vrot.slane %v116, 4
    %v118 = vrot.slane %v113, 5
    %v119 = vrot.slane %v118, 4
    %v122 = vadd.f32 %v108, %v117
    %v123 = vadd.f32 %v109, %v119
    %s124 = sld [smem:[#allocation6 + $0x6]]
    %v125 = vstv %s124
    %v126 = vmul.f32 %v56, %v125
    %v127 = vmul.f32 %v57, %v125
    %v130 = vrot.slane %v126, 6
    %v131 = vrot.slane %v130, 4
    %v132 = vrot.slane %v127, 6
    %v133 = vrot.slane %v132, 4
    %v136 = vadd.f32 %v122, %v131
    %v137 = vadd.f32 %v123, %v133
    %s138 = sld [smem:[#allocation6 + $0x7]]
    %v139 = vstv %s138
    %v140 = vmul.f32 %v56, %v139
    %v141 = vmul.f32 %v57, %v139
    %v144 = vrot.slane %v140, 7
    %v145 = vrot.slane %v144, 4
    %v146 = vrot.slane %v141, 7
    %v147 = vrot.slane %v146, 4
    %v150 = vadd.f32 %v136, %v145
    %v151 = vadd.f32 %v137, %v147
    %v152 = vmax.f32 %v150, 0.0
    %v153 = vmax.f32 %v151, 0.0
    %s154 = sld [smem:[#allocation6 + $0x8]]
    %v155 = vstv %s154
    %v156 = vmul.f32 %v56, %v155
    %v157 = vmul.f32 %v57, %v155
    %s158 = sld [smem:[#allocation6 + $0x9]]
    %v159 = vstv %s158
    %v160 = vmul.f32 %v56, %v159
    %v161 = vmul.f32 %v57, %v159
    %v164 = vrot.slane %v160, 5
    %v165 = vrot.slane %v164, 4
    %v166 = vrot.slane %v161, 5
    %v167 = vrot.slane %v166, 4
    %v170 = vadd.f32 %v156, %v165
    %v171 = vadd.f32 %v157, %v167
    %s172 = sld [smem:[#allocation6 + $0xa]]
    %v173 = vstv %s172
    %v174 = vmul.f32 %v56, %v173
    %v175 = vmul.f32 %v57, %v173
    %v178 = vrot.slane %v174, 6
    %v179 = vrot.slane %v178, 4
    %v180 = vrot.slane %v175, 6
    %v181 = vrot.slane %v180, 4
    %v184 = vadd.f32 %v170, %v179
    %v185 = vadd.f32 %v171, %v181
    %s186 = sld [smem:[#allocation6 + $0xb]]
    %v187 = vstv %s186
    %v188 = vmul.f32 %v56, %v187
    %v189 = vmul.f32 %v57, %v187
    %v192 = vrot.slane %v188, 7
    %v193 = vrot.slane %v192, 4
    %v194 = vrot.slane %v189, 7
    %v195 = vrot.slane %v194, 4
    %v198 = vadd.f32 %v184, %v193
    %v199 = vadd.f32 %v185, %v195
    %v200 = vmax.f32 %v198, 0.0
    %v201 = vmax.f32 %v199, 0.0
    %s202 = sld [smem:[#allocation6 + $0xc]]
    %v203 = vstv %s202
    %v204 = vmul.f32 %v56, %v203
    %v205 = vmul.f32 %v57, %v203
    %s206 = sld [smem:[#allocation6 + $0xd]]
    %v207 = vstv %s206
    %v208 = vmul.f32 %v56, %v207
    %v209 = vmul.f32 %v57, %v207
    %v212 = vrot.slane %v208, 5
    %v213 = vrot.slane %v212, 4
    %v214 = vrot.slane %v209, 5
    %v215 = vrot.slane %v214, 4
    %v218 = vadd.f32 %v204, %v213
    %v219 = vadd.f32 %v205, %v215
    %s220 = sld [smem:[#allocation6 + $0xe]]
    %v221 = vstv %s220
    %v222 = vmul.f32 %v56, %v221
    %v223 = vmul.f32 %v57, %v221
    %v226 = vrot.slane %v222, 6
    %v227 = vrot.slane %v226, 4
    %v228 = vrot.slane %v223, 6
    %v229 = vrot.slane %v228, 4
    %v232 = vadd.f32 %v218, %v227
    %v233 = vadd.f32 %v219, %v229
    %s234 = sld [smem:[#allocation6 + $0xf]]
    %v235 = vstv %s234
    %v236 = vmul.f32 %v56, %v235
    %v237 = vmul.f32 %v57, %v235
    %v240 = vrot.slane %v236, 7
    %v241 = vrot.slane %v240, 4
    %v242 = vrot.slane %v237, 7
    %v243 = vrot.slane %v242, 4
    %v246 = vadd.f32 %v232, %v241
    %v247 = vadd.f32 %v233, %v243
    %v248 = vmax.f32 %v246, 0.0
    %v249 = vmax.f32 %v247, 0.0
    %s250 = sld [smem:[#allocation6 + $0x10]]
    %v251 = vstv %s250
    %v252 = vmul.f32 %v56, %v251
    %v253 = vmul.f32 %v57, %v251
    %s254 = sld [smem:[#allocation6 + $0x11]]
    %v255 = vstv %s254
    %v256 = vmul.f32 %v56, %v255
    %v257 = vmul.f32 %v57, %v255
    %v260 = vrot.slane %v256, 5
    %v261 = vrot.slane %v260, 4
    %v262 = vrot.slane %v257, 5
    %v263 = vrot.slane %v262, 4
    %v266 = vadd.f32 %v252, %v261
    %v267 = vadd.f32 %v253, %v263
    %s268 = sld [smem:[#allocation6 + $0x12]]
    %v269 = vstv %s268
    %v270 = vmul.f32 %v56, %v269
    %v271 = vmul.f32 %v57, %v269
    %v274 = vrot.slane %v270, 6
    %v275 = vrot.slane %v274, 4
    %v276 = vrot.slane %v271, 6
    %v277 = vrot.slane %v276, 4
    %v280 = vadd.f32 %v266, %v275
    %v281 = vadd.f32 %v267, %v277
    %s282 = sld [smem:[#allocation6 + $0x13]]
    %v283 = vstv %s282
    %v284 = vmul.f32 %v56, %v283
    %v285 = vmul.f32 %v57, %v283
    %v288 = vrot.slane %v284, 7
    %v289 = vrot.slane %v288, 4
    %v290 = vrot.slane %v285, 7
    %v291 = vrot.slane %v290, 4
    %v294 = vadd.f32 %v280, %v289
    %v295 = vadd.f32 %v281, %v291
    %v296 = vmax.f32 %v294, 0.0
    %v297 = vmax.f32 %v295, 0.0
    %s298 = sld [smem:[#allocation6 + $0x14]]
    %v299 = vstv %s298
    %v300 = vmul.f32 %v56, %v299
    %v301 = vmul.f32 %v57, %v299
    %s302 = sld [smem:[#allocation6 + $0x15]]
    %v303 = vstv %s302
    %v304 = vmul.f32 %v56, %v303
    %v305 = vmul.f32 %v57, %v303
    %v308 = vrot.slane %v304, 5
    %v309 = vrot.slane %v308, 4
    %v310 = vrot.slane %v305, 5
    %v311 = vrot.slane %v310, 4
    %v314 = vadd.f32 %v300, %v309
    %v315 = vadd.f32 %v301, %v311
    %s316 = sld [smem:[#allocation6 + $0x16]]
    %v317 = vstv %s316
    %v318 = vmul.f32 %v56, %v317
    %v319 = vmul.f32 %v57, %v317
    %v322 = vrot.slane %v318, 6
    %v323 = vrot.slane %v322, 4
    %v324 = vrot.slane %v319, 6
    %v325 = vrot.slane %v324, 4
    %v328 = vadd.f32 %v314, %v323
    %v329 = vadd.f32 %v315, %v325
    %s330 = sld [smem:[#allocation6 + $0x17]]
    %v331 = vstv %s330
    %v332 = vmul.f32 %v56, %v331
    %v333 = vmul.f32 %v57, %v331
    %v336 = vrot.slane %v332, 7
    %v337 = vrot.slane %v336, 4
    %v338 = vrot.slane %v333, 7
    %v339 = vrot.slane %v338, 4
    %v342 = vadd.f32 %v328, %v337
    %v343 = vadd.f32 %v329, %v339
    %v344 = vmax.f32 %v342, 0.0
    %v345 = vmax.f32 %v343, 0.0
    %s346 = sld [smem:[#allocation6 + $0x18]]
    %v347 = vstv %s346
    %v348 = vmul.f32 %v56, %v347
    %v349 = vmul.f32 %v57, %v347
    %s350 = sld [smem:[#allocation6 + $0x19]]
    %v351 = vstv %s350
    %v352 = vmul.f32 %v56, %v351
    %v353 = vmul.f32 %v57, %v351
    %v356 = vrot.slane %v352, 5
    %v357 = vrot.slane %v356, 4
    %v358 = vrot.slane %v353, 5
    %v359 = vrot.slane %v358, 4
    %v362 = vadd.f32 %v348, %v357
    %v363 = vadd.f32 %v349, %v359
    %s364 = sld [smem:[#allocation6 + $0x1a]]
    %v365 = vstv %s364
    %v366 = vmul.f32 %v56, %v365
    %v367 = vmul.f32 %v57, %v365
    %v370 = vrot.slane %v366, 6
    %v371 = vrot.slane %v370, 4
    %v372 = vrot.slane %v367, 6
    %v373 = vrot.slane %v372, 4
    %v376 = vadd.f32 %v362, %v371
    %v377 = vadd.f32 %v363, %v373
    %s378 = sld [smem:[#allocation6 + $0x1b]]
    %v379 = vstv %s378
    %v380 = vmul.f32 %v56, %v379
    %v381 = vmul.f32 %v57, %v379
    %v384 = vrot.slane %v380, 7
    %v385 = vrot.slane %v384, 4
    %v386 = vrot.slane %v381, 7
    %v387 = vrot.slane %v386, 4
    %v390 = vadd.f32 %v376, %v385
    %v391 = vadd.f32 %v377, %v387
    %v392 = vmax.f32 %v390, 0.0
    %v393 = vmax.f32 %v391, 0.0
    %s394 = sld [smem:[#allocation6 + $0x1c]]
    %v395 = vstv %s394
    %v396 = vmul.f32 %v56, %v395
    %v397 = vmul.f32 %v57, %v395
    %s398 = sld [smem:[#allocation6 + $0x1d]]
    %v399 = vstv %s398
    %v400 = vmul.f32 %v56, %v399
    %v401 = vmul.f32 %v57, %v399
    %v404 = vrot.slane %v400, 5
    %v405 = vrot.slane %v404, 4
    %v406 = vrot.slane %v401, 5
    %v407 = vrot.slane %v406, 4
    %v410 = vadd.f32 %v396, %v405
    %v411 = vadd.f32 %v397, %v407
    %s412 = sld [smem:[#allocation6 + $0x1e]]
    %v413 = vstv %s412
    %v414 = vmul.f32 %v56, %v413
    %v415 = vmul.f32 %v57, %v413
    %v418 = vrot.slane %v414, 6
    %v419 = vrot.slane %v418, 4
    %v420 = vrot.slane %v415, 6
    %v421 = vrot.slane %v420, 4
    %v424 = vadd.f32 %v410, %v419
    %v425 = vadd.f32 %v411, %v421
    %s426 = sld [smem:[#allocation6 + $0x1f]]
    %v427 = vstv %s426
    %v428 = vmul.f32 %v56, %v427
    %v429 = vmul.f32 %v57, %v427
    %v432 = vrot.slane %v428, 7
    %v433 = vrot.slane %v432, 4
    %v434 = vrot.slane %v429, 7
    %v435 = vrot.slane %v434, 4
    %v438 = vadd.f32 %v424, %v433
    %v439 = vadd.f32 %v425, %v435
    %v440 = vmax.f32 %v438, 0.0
    %v441 = vmax.f32 %v439, 0.0
    %v444 = vlaneseq
    %v445 = vshrl.u32 %v444, 7
    %v446 = vsub.s32 0, %v445
    %v447 = vrot.slane %v104, %v446
    %v448 = vlaneseq
    %v449 = vshrl.u32 %v448, 7
    %v450 = vsub.s32 4, %v449
    %v451 = vrot.slane %v104, %v450
    %v452 = vlaneseq
    %v453 = vshrl.u32 %v452, 7
    %v454 = vsub.s32 0, %v453
    %v455 = vrot.slane %v105, %v454
    %v456 = vlaneseq
    %v457 = vshrl.u32 %v456, 7
    %v458 = vsub.s32 4, %v457
    %v459 = vrot.slane %v105, %v458
    %v466 = vlaneseq
    %v467 = vshrl.u32 %v466, 7
    %v468 = vsub.s32 0, %v467
    %v469 = vrot.slane %v152, %v468
    %v470 = vlaneseq
    %v471 = vshrl.u32 %v470, 7
    %v472 = vsub.s32 4, %v471
    %v473 = vrot.slane %v152, %v472
    %v474 = vlaneseq
    %v475 = vshrl.u32 %v474, 7
    %v476 = vsub.s32 0, %v475
    %v477 = vrot.slane %v153, %v476
    %v478 = vlaneseq
    %v479 = vshrl.u32 %v478, 7
    %v480 = vsub.s32 4, %v479
    %v481 = vrot.slane %v153, %v480
    %v488 = vlaneseq
    %v489 = vshrl.u32 %v488, 7
    %v490 = vsub.s32 0, %v489
    %v491 = vrot.slane %v200, %v490
    %v492 = vlaneseq
    %v493 = vshrl.u32 %v492, 7
    %v494 = vsub.s32 4, %v493
    %v495 = vrot.slane %v200, %v494
    %v496 = vlaneseq
    %v497 = vshrl.u32 %v496, 7
    %v498 = vsub.s32 0, %v497
    %v499 = vrot.slane %v201, %v498
    %v500 = vlaneseq
    %v501 = vshrl.u32 %v500, 7
    %v502 = vsub.s32 4, %v501
    %v503 = vrot.slane %v201, %v502
    %v510 = vlaneseq
    %v511 = vshrl.u32 %v510, 7
    %v512 = vsub.s32 0, %v511
    %v513 = vrot.slane %v248, %v512
    %v514 = vlaneseq
    %v515 = vshrl.u32 %v514, 7
    %v516 = vsub.s32 4, %v515
    %v517 = vrot.slane %v248, %v516
    %v518 = vlaneseq
    %v519 = vshrl.u32 %v518, 7
    %v520 = vsub.s32 0, %v519
    %v521 = vrot.slane %v249, %v520
    %v522 = vlaneseq
    %v523 = vshrl.u32 %v522, 7
    %v524 = vsub.s32 4, %v523
    %v525 = vrot.slane %v249, %v524
    %v532 = vlaneseq
    %v533 = vshrl.u32 %v532, 7
    %v534 = vsub.s32 0, %v533
    %v535 = vrot.slane %v296, %v534
    %v536 = vlaneseq
    %v537 = vshrl.u32 %v536, 7
    %v538 = vsub.s32 4, %v537
    %v539 = vrot.slane %v296, %v538
    %v540 = vlaneseq
    %v541 = vshrl.u32 %v540, 7
    %v542 = vsub.s32 0, %v541
    %v543 = vrot.slane %v297, %v542
    %v544 = vlaneseq
    %v545 = vshrl.u32 %v544, 7
    %v546 = vsub.s32 4, %v545
    %v547 = vrot.slane %v297, %v546
    %v554 = vlaneseq
    %v555 = vshrl.u32 %v554, 7
    %v556 = vsub.s32 0, %v555
    %v557 = vrot.slane %v344, %v556
    %v558 = vlaneseq
    %v559 = vshrl.u32 %v558, 7
    %v560 = vsub.s32 4, %v559
    %v561 = vrot.slane %v344, %v560
    %v562 = vlaneseq
    %v563 = vshrl.u32 %v562, 7
    %v564 = vsub.s32 0, %v563
    %v565 = vrot.slane %v345, %v564
    %v566 = vlaneseq
    %v567 = vshrl.u32 %v566, 7
    %v568 = vsub.s32 4, %v567
    %v569 = vrot.slane %v345, %v568
    %v576 = vlaneseq
    %v577 = vshrl.u32 %v576, 7
    %v578 = vsub.s32 0, %v577
    %v579 = vrot.slane %v392, %v578
    %v580 = vlaneseq
    %v581 = vshrl.u32 %v580, 7
    %v582 = vsub.s32 4, %v581
    %v583 = vrot.slane %v392, %v582
    %v584 = vlaneseq
    %v585 = vshrl.u32 %v584, 7
    %v586 = vsub.s32 0, %v585
    %v587 = vrot.slane %v393, %v586
    %v588 = vlaneseq
    %v589 = vshrl.u32 %v588, 7
    %v590 = vsub.s32 4, %v589
    %v591 = vrot.slane %v393, %v590
    %v598 = vlaneseq
    %v599 = vshrl.u32 %v598, 7
    %v600 = vsub.s32 0, %v599
    %v601 = vrot.slane %v440, %v600
    %v602 = vlaneseq
    %v603 = vshrl.u32 %v602, 7
    %v604 = vsub.s32 4, %v603
    %v605 = vrot.slane %v440, %v604
    %v606 = vlaneseq
    %v607 = vshrl.u32 %v606, 7
    %v608 = vsub.s32 0, %v607
    %v609 = vrot.slane %v441, %v608
    %v610 = vlaneseq
    %v611 = vshrl.u32 %v610, 7
    %v612 = vsub.s32 4, %v611
    %v613 = vrot.slane %v441, %v612
    %vm618 = vcmask 1040384
    %v619 = vsel %vm618, %v447, %v469
    %v620 = vsel %vm618, %v451, %v473
    %v621 = vsel %vm618, %v455, %v477
    %v622 = vsel %vm618, %v459, %v481
    %vm623 = vcmask 1041408
    %v624 = vsel %vm623, %v619, %v491
    %v625 = vsel %vm623, %v620, %v495
    %v626 = vsel %vm623, %v621, %v499
    %v627 = vsel %vm623, %v622, %v503
    %vm628 = vcmask 1042432
    %v629 = vsel %vm628, %v624, %v513
    %v630 = vsel %vm628, %v625, %v517
    %v631 = vsel %vm628, %v626, %v521
    %v632 = vsel %vm628, %v627, %v525
    %vm633 = vcmask 1043456
    %v634 = vsel %vm633, %v629, %v535
    %v635 = vsel %vm633, %v630, %v539
    %v636 = vsel %vm633, %v631, %v543
    %v637 = vsel %vm633, %v632, %v547
    %vm638 = vcmask 1044480
    %v639 = vsel %vm638, %v634, %v557
    %v640 = vsel %vm638, %v635, %v561
    %v641 = vsel %vm638, %v636, %v565
    %v642 = vsel %vm638, %v637, %v569
    %vm643 = vcmask 1045504
    %v644 = vsel %vm643, %v639, %v579
    %v645 = vsel %vm643, %v640, %v583
    %v646 = vsel %vm643, %v641, %v587
    %v647 = vsel %vm643, %v642, %v591
    %vm648 = vcmask 1046528
    %v649 = vsel %vm648, %v644, %v601
    %v650 = vsel %vm648, %v645, %v605
    %v651 = vsel %vm648, %v646, %v609
    %v652 = vsel %vm648, %v647, %v613
    %v653 = vadd.f32 %v649, %v650
    %654 = vadd.xlane.f32.xlu0 %v653
    %v655 = vpop.xlane.xlu0 %654
    %v656 = vadd.f32 %v651, %v652
    %657 = vadd.xlane.f32.xlu0 %v656
    %v658 = vpop.xlane.xlu0 %657
    %v659 = vrcp.pop 256.0
    %v660 = vmul.f32 %v655, %v659
    %v661 = vmul.f32 %v658, %v659
    %v662 = vld [vmem:[#allocation7] sm:$0xff]
    %v663 = vld [vmem:[#allocation7 + $0x8] sm:$0x1]
    %v664 = vlaneseq
    %v665 = vshrl.u32 %v664, 7
    %v666 = vsub.s32 0, %v665
    %v667 = vrot.slane %v663, %v666
    %v670 = vlaneseq
    %v671 = vand.u32 %v670, 127
    %v672 = vlaneseq
    %v673 = vshrl.u32 %v672, 7
    %v674 = vsub.s32 %v671, %v673
    %v675 = vrot.slane %v660, %v674
    %v676 = vlaneseq
    %v677 = vshrl.u32 %v676, 7
    %v678 = vsub.s32 %v671, %v677
    %v679 = vrot.slane %v661, %v678
    %vm680 = vcmask 1041409
    %v681 = vsel %vm680, %v679, %v675
    %vm682 = vcmask 64512
    %v683 = vsel %vm682, %v681, 0
    %685 = vmatprep.subr.mxu0 0.0
    %686 = vmatpush1.msra.mxu0 %v662
    %687 = vmatprep.subr.mxu0 0.0
    %688 = vmatpush1.msra.mxu0 0.0
    %689 = vmatprep.subr.mxu0 0.0
    %690 = vmatpush1.msra.mxu0 0.0
    %691 = vmatprep.subr.mxu0 0.0
    %692 = vmatpush1.msra.mxu0 0.0
    %693 = vmatprep.subr.mxu0 0.0
    %694 = vmatpush1.msra.mxu0 0.0
    %695 = vmatprep.subr.mxu0 0.0
    %696 = vmatpush1.msra.mxu0 0.0
    %697 = vmatprep.subr.mxu0 0.0
    %698 = vmatpush1.msra.mxu0 0.0
    %699 = vmatprep.subr.mxu0 0.0
    %700 = vmatpush1.msra.mxu0 0.0
    %701 = vmatprep.subr.mxu0 0.0
    %702 = vmatpush1.msra.mxu0 0.0
    %703 = vmatprep.subr.mxu0 0.0
    %704 = vmatpush1.msra.mxu0 0.0
    %705 = vmatprep.subr.mxu0 0.0
    %706 = vmatpush1.msra.mxu0 0.0
    %707 = vmatprep.subr.mxu0 0.0
    %708 = vmatpush1.msra.mxu0 0.0
    %709 = vmatprep.subr.mxu0 0.0
    %710 = vmatpush1.msra.mxu0 0.0
    %711 = vmatprep.subr.mxu0 0.0
    %712 = vmatpush1.msra.mxu0 0.0
    %713 = vmatprep.subr.mxu0 0.0
    %714 = vmatpush1.msra.mxu0 0.0
    %715 = vmatprep.subr.mxu0 0.0
    %716 = vmatpush1.msra.mxu0 0.0
    %717 = vmatprep.subr.mxu0 0.0
    %718 = vmatpush1.msra.mxu0 0.0
    %719 = vmatprep.subr.mxu0 0.0
    %720 = vmatpush1.msra.mxu0 0.0
    %721 = vmatprep.subr.mxu0 0.0
    %722 = vmatpush1.msra.mxu0 0.0
    %723 = vmatprep.subr.mxu0 0.0
    %724 = vmatpush1.msra.mxu0 0.0
    %725 = vmatprep.subr.mxu0 0.0
    %726 = vmatpush1.msra.mxu0 0.0
    %727 = vmatprep.subr.mxu0 0.0
    %728 = vmatpush1.msra.mxu0 0.0
    %729 = vmatprep.subr.mxu0 0.0
    %730 = vmatpush1.msra.mxu0 0.0
    %731 = vmatprep.subr.mxu0 0.0
    %732 = vmatpush1.msra.mxu0 0.0
    %733 = vmatprep.subr.mxu0 0.0
    %734 = vmatpush1.msra.mxu0 0.0
    %735 = vmatprep.subr.mxu0 0.0
    %736 = vmatpush1.msra.mxu0 0.0
    %737 = vmatprep.subr.mxu0 0.0
    %738 = vmatpush1.msra.mxu0 0.0
    %739 = vmatprep.subr.mxu0 0.0
    %740 = vmatpush1.msra.mxu0 0.0
    %741 = vmatprep.subr.mxu0 0.0
    %742 = vmatpush1.msra.mxu0 0.0
    %743 = vmatprep.subr.mxu0 0.0
    %744 = vmatpush1.msra.mxu0 0.0
    %745 = vmatprep.subr.mxu0 0.0
    %746 = vmatpush1.msra.mxu0 0.0
    %747 = vmatprep.subr.mxu0 0.0
    %748 = vmatpush1.msra.mxu0 0.0
    %749 = vmatprep.mubr.f32.mxu0 0.0
    %750 = vmatmul.mubr.f32.gmra.mrb[0].mxu0 %v683
    %v751 = vpop.f32.mrb[0].mxu0
    %v752 = vadd.f32 %v667, %v751
    %v753 = vpop.f32.mrb[0].mxu0
    %754 = vdwg.mxu0
    %v755 = vld [vmem:[#allocation7 + $0x10] sm:$0xff]
    %v756 = vld [vmem:[#allocation7 + $0x18] sm:$0xff]
    %v757 = vld [vmem:[#allocation7 + $0x20] sm:$0xff]
    %v758 = vld [vmem:[#allocation7 + $0x28] sm:$0xff]
    %vm759 = vcmask 261120
    %v761 = vsel %vm759, %v752, 0
    %763 = vmatprep.subr.mxu0 0.0
    %764 = vmatpush1.msra.mxu0 %v755
    %765 = vmatprep.subr.mxu0 0.0
    %766 = vmatpush1.msra.mxu0 %v756
    %767 = vmatprep.subr.mxu0 0.0
    %768 = vmatpush1.msra.mxu0 %v757
    %769 = vmatprep.subr.mxu0 0.0
    %770 = vmatpush1.msra.mxu0 %v758
    %771 = vmatprep.subr.mxu0 0.0
    %772 = vmatpush1.msra.mxu0 0.0
    %773 = vmatprep.subr.mxu0 0.0
    %774 = vmatpush1.msra.mxu0 0.0
    %775 = vmatprep.subr.mxu0 0.0
    %776 = vmatpush1.msra.mxu0 0.0
    %777 = vmatprep.subr.mxu0 0.0
    %778 = vmatpush1.msra.mxu0 0.0
    %779 = vmatprep.subr.mxu0 0.0
    %780 = vmatpush1.msra.mxu0 0.0
    %781 = vmatprep.subr.mxu0 0.0
    %782 = vmatpush1.msra.mxu0 0.0
    %783 = vmatprep.subr.mxu0 0.0
    %784 = vmatpush1.msra.mxu0 0.0
    %785 = vmatprep.subr.mxu0 0.0
    %786 = vmatpush1.msra.mxu0 0.0
    %787 = vmatprep.subr.mxu0 0.0
    %788 = vmatpush1.msra.mxu0 0.0
    %789 = vmatprep.subr.mxu0 0.0
    %790 = vmatpush1.msra.mxu0 0.0
    %791 = vmatprep.subr.mxu0 0.0
    %792 = vmatpush1.msra.mxu0 0.0
    %793 = vmatprep.subr.mxu0 0.0
    %794 = vmatpush1.msra.mxu0 0.0
    %795 = vmatprep.subr.mxu0 0.0
    %796 = vmatpush1.msra.mxu0 0.0
    %797 = vmatprep.subr.mxu0 0.0
    %798 = vmatpush1.msra.mxu0 0.0
    %799 = vmatprep.subr.mxu0 0.0
    %800 = vmatpush1.msra.mxu0 0.0
    %801 = vmatprep.subr.mxu0 0.0
    %802 = vmatpush1.msra.mxu0 0.0
    %803 = vmatprep.subr.mxu0 0.0
    %804 = vmatpush1.msra.mxu0 0.0
    %805 = vmatprep.subr.mxu0 0.0
    %806 = vmatpush1.msra.mxu0 0.0
    %807 = vmatprep.subr.mxu0 0.0
    %808 = vmatpush1.msra.mxu0 0.0
    %809 = vmatprep.subr.mxu0 0.0
    %810 = vmatpush1.msra.mxu0 0.0
    %811 = vmatprep.subr.mxu0 0.0
    %812 = vmatpush1.msra.mxu0 0.0
    %813 = vmatprep.subr.mxu0 0.0
    %814 = vmatpush1.msra.mxu0 0.0
    %815 = vmatprep.subr.mxu0 0.0
    %816 = vmatpush1.msra.mxu0 0.0
    %817 = vmatprep.subr.mxu0 0.0
    %818 = vmatpush1.msra.mxu0 0.0
    %819 = vmatprep.subr.mxu0 0.0
    %820 = vmatpush1.msra.mxu0 0.0
    %821 = vmatprep.subr.mxu0 0.0
    %822 = vmatpush1.msra.mxu0 0.0
    %823 = vmatprep.subr.mxu0 0.0
    %824 = vmatpush1.msra.mxu0 0.0
    %825 = vmatprep.subr.mxu0 0.0
    %826 = vmatpush1.msra.mxu0 0.0
    %827 = vmatprep.mubr.f32.mxu0 0.0
    %828 = vmatmul.mubr.f32.gmra.mrb[0].mxu0 %v761
    %v829 = vpop.f32.mrb[0].mxu0
    %v830 = vadd.f32 0.0, %v829
    %v831 = vpop.f32.mrb[0].mxu0
    %832 = vdwg.mxu0
    %vm833 = vcmask 517120
    %v834 = vsel %vm833, %v830, 0.0
    %v835 = vrot.slane %v834, 4
    %v836 = vadd.f32 %v834, %v835
    %v837 = vrot.slane %v836, 2
    %v838 = vadd.f32 %v836, %v837
    %v839 = vrot.slane %v838, 1
    %v840 = vadd.f32 %v838, %v839
    %v841 = vrcp.pop 2.0
    %v842 = vmul.f32 %v840, %v841
    %v843 = vsub.f32 %v830, %v842
    %v844 = vmul.f32 %v843, %v843
    %v845 = vsel %vm833, %v844, 0.0
    %v846 = vrot.slane %v845, 4
    %v847 = vadd.f32 %v845, %v846
    %v848 = vrot.slane %v847, 2
    %v849 = vadd.f32 %v847, %v848
    %v850 = vrot.slane %v849, 1
    %v851 = vadd.f32 %v849, %v850
    %v852 = vmul.f32 %v851, %v841
    %v853 = vld [vmem:[#allocation7 + $0x9] sm:$0x1]
    %v854 = vld [vmem:[#allocation7 + $0xa] sm:$0x1]
    %v855 = vadd.f32 %v852, 1e-05
    %v856 = vrsqrt.pop %v855
    %v857 = vmul.f32 %v843, %v856
    %v858 = vlaneseq
    %v859 = vshrl.u32 %v858, 7
    %v860 = vsub.s32 0, %v859
    %v861 = vrot.slane %v853, %v860
    %v862 = vmul.f32 %v857, %v861
    %v863 = vlaneseq
    %v864 = vshrl.u32 %v863, 7
    %v865 = vsub.s32 0, %v864
    %v866 = vrot.slane %v854, %v865
    %v867 = vadd.f32 %v862, %v866
    %v868 = vmax.f32 %v867, 0.0
    %v869 = vld [vmem:[#allocation7 + $0x30] sm:$0xff]
    %v870 = vld [vmem:[#allocation7 + $0x38] sm:$0xff]
    %v871 = vld [vmem:[#allocation7 + $0x40] sm:$0xff]
    %v872 = vld [vmem:[#allocation7 + $0x48] sm:$0xff]
    %v873 = vld [vmem:[#allocation7 + $0x50] sm:$0xff]
    %v874 = vld [vmem:[#allocation7 + $0x58] sm:$0xff]
    %v875 = vld [vmem:[#allocation7 + $0x60] sm:$0xff]
    %v876 = vld [vmem:[#allocation7 + $0x68] sm:$0xff]
    %v877 = vld [vmem:[#allocation7 + $0xb] sm:$0x1]
    %v878 = vlaneseq
    %v879 = vshrl.u32 %v878, 7
    %v880 = vsub.s32 0, %v879
    %v881 = vrot.slane %v877, %v880
    %vm882 = vcmask 523264
    %v884 = vsel %vm882, %v868, 0
    %886 = vmatprep.subr.mxu0 0.0
    %887 = vmatpush1.msra.mxu0 %v869
    %888 = vmatprep.subr.mxu0 0.0
    %889 = vmatpush1.msra.mxu0 %v870
    %890 = vmatprep.subr.mxu0 0.0
    %891 = vmatpush1.msra.mxu0 %v871
    %892 = vmatprep.subr.mxu0 0.0
    %893 = vmatpush1.msra.mxu0 %v872
    %894 = vmatprep.subr.mxu0 0.0
    %895 = vmatpush1.msra.mxu0 %v873
    %896 = vmatprep.subr.mxu0 0.0
    %897 = vmatpush1.msra.mxu0 %v874
    %898 = vmatprep.subr.mxu0 0.0
    %899 = vmatpush1.msra.mxu0 %v875
    %900 = vmatprep.subr.mxu0 0.0
    %901 = vmatpush1.msra.mxu0 %v876
    %902 = vmatprep.subr.mxu0 0.0
    %903 = vmatpush1.msra.mxu0 0.0
    %904 = vmatprep.subr.mxu0 0.0
    %905 = vmatpush1.msra.mxu0 0.0
    %906 = vmatprep.subr.mxu0 0.0
    %907 = vmatpush1.msra.mxu0 0.0
    %908 = vmatprep.subr.mxu0 0.0
    %909 = vmatpush1.msra.mxu0 0.0
    %910 = vmatprep.subr.mxu0 0.0
    %911 = vmatpush1.msra.mxu0 0.0
    %912 = vmatprep.subr.mxu0 0.0
    %913 = vmatpush1.msra.mxu0 0.0
    %914 = vmatprep.subr.mxu0 0.0
    %915 = vmatpush1.msra.mxu0 0.0
    %916 = vmatprep.subr.mxu0 0.0
    %917 = vmatpush1.msra.mxu0 0.0
    %918 = vmatprep.subr.mxu0 0.0
    %919 = vmatpush1.msra.mxu0 0.0
    %920 = vmatprep.subr.mxu0 0.0
    %921 = vmatpush1.msra.mxu0 0.0
    %922 = vmatprep.subr.mxu0 0.0
    %923 = vmatpush1.msra.mxu0 0.0
    %924 = vmatprep.subr.mxu0 0.0
    %925 = vmatpush1.msra.mxu0 0.0
    %926 = vmatprep.subr.mxu0 0.0
    %927 = vmatpush1.msra.mxu0 0.0
    %928 = vmatprep.subr.mxu0 0.0
    %929 = vmatpush1.msra.mxu0 0.0
    %930 = vmatprep.subr.mxu0 0.0
    %931 = vmatpush1.msra.mxu0 0.0
    %932 = vmatprep.subr.mxu0 0.0
    %933 = vmatpush1.msra.mxu0 0.0
    %934 = vmatprep.subr.mxu0 0.0
    %935 = vmatpush1.msra.mxu0 0.0
    %936 = vmatprep.subr.mxu0 0.0
    %937 = vmatpush1.msra.mxu0 0.0
    %938 = vmatprep.subr.mxu0 0.0
    %939 = vmatpush1.msra.mxu0 0.0
    %940 = vmatprep.subr.mxu0 0.0
    %941 = vmatpush1.msra.mxu0 0.0
    %942 = vmatprep.subr.mxu0 0.0
    %943 = vmatpush1.msra.mxu0 0.0
    %944 = vmatprep.subr.mxu0 0.0
    %945 = vmatpush1.msra.mxu0 0.0
    %946 = vmatprep.subr.mxu0 0.0
    %947 = vmatpush1.msra.mxu0 0.0
    %948 = vmatprep.subr.mxu0 0.0
    %949 = vmatpush1.msra.mxu0 0.0
    %950 = vmatprep.mubr.f32.mxu0 0.0
    %951 = vmatmul.mubr.f32.gmra.mrb[0].mxu0 %v884
    %v952 = vpop.f32.mrb[0].mxu0
    %v953 = vadd.f32 %v881, %v952
    %v954 = vpop.f32.mrb[0].mxu0
    %955 = vdwg.mxu0
    %957 = vrot.lane.b32.xlu0 %v953, 32
    %v958 = vpop.permute.xlu0 %957
    %v960 = vsel %vm759, %v752, %v958
    %vm961 = vcmask 392192
    %v962 = vsel %vm961, %v960, 0.0
    %963 = vst [vmem:[#allocation9] sm:$0x3] %v962
    // Predicated region
    $region26: #{tpu_custom_call.1} parent=1 // pred_check
      _
    $region27: #{tpu_custom_call.1} parent=1 // pred_check_branch
      %965 = sbr.rel (0) target = $region29
    $region28: #{tpu_custom_call.1} parent=1 // pred_region
      %s967 = ssub.s32 32, 32
      %968 = vsyncadd [#allocation4], %s967
      %s970 = sshll.u32 [#allocation9], 4
      %s971 = int_to_ptr.vmem [resolvable:$true] %s970
      %973 = dma.vmem_to_hbm [thread:$0]  %s971, 32, %s3, [#allocation4]
    $region29: #{tpu_custom_call.1} parent=1 // pred_fallthru
      _
    // Predicated region
    $region30: #{tpu_custom_call.1} parent=1 // pred_check
      _
    $region31: #{tpu_custom_call.1} parent=1 // pred_check_branch
      %975 = sbr.rel (0) target = $region33
    $region32: #{tpu_custom_call.1} parent=1 // pred_region
      %976 = dma.done [#allocation4], 32
    $region33: #{tpu_custom_call.1} parent=1 // pred_fallthru
      _
    %977 = vsyncpa [#allocation3], 1
    %978 = vsyncpa [#allocation8], 1
    %979 = vsyncpa [#allocation4], 1
    %980 = vsyncpa [#allocation5], 1

</llo_original>
